<compile_context>
chip_gen: v7x
topology: tpu7x:2x2x1
jax: 0.10.0
libtpu: 0.0.40
codegen_flags: <defaults>
</compile_context>

<pallas_src>
import functools

import jax
import jax.numpy as jnp
from jax import lax
from jax.experimental import pallas as pl
from jax.experimental.pallas import tpu as pltpu

_MARGIN = 128   # lane margin in the scratch so every tap-slice start is non-negative & in-bounds


def _res_layer_kernel(x_ref, w1_ref, b1_ref, w2_ref, b2_ref, mask_ref,
                      o_ref, hp_ref, *, Wp):
    # x_ref   : (Cin, L)      slab of Bt images, channel-major; each image occupies a
    #                         128-multiple window of lanes holding its zero-bordered
    #                         (H+2)x(W+2) map flattened row-major (border pre-baked on host)
    # w1_ref  : (Cmid, Cin)   1x1 conv weights, BN1 scale folded in
    # b1_ref  : (Cmid, 1)     folded BN1 bias
    # w2_ref  : (Cin, 9*Cmid) 3x3 conv weights, tap-major columns, BN2 scale folded in
    # b2_ref  : (Cin, 1)      folded BN2 bias
    # mask_ref: (1, L)        1.0 on interior pixels, 0.0 on border / lane-rounding positions
    # o_ref   : (Cin, L)      same layout as x_ref (interior lanes = real output)
    # hp_ref  : (Cmid, L+256) scratch; layer-1 map staged at lane _MARGIN (aligned)
    L = x_ref.shape[1]
    Cmid = w1_ref.shape[0]
    Lsc = hp_ref.shape[1]

    # Margins are only ever read into output lanes the wrapper strips (the per-image
    # border keeps interior taps inside each image's own window), so zeroing them is
    # cosmetic; do it once — the scratch persists across grid steps.
    @pl.when(pl.program_id(0) == 0)
    def _():
        hp_ref[:, :_MARGIN] = jnp.zeros((Cmid, _MARGIN), jnp.float32)
        hp_ref[:, _MARGIN + L:] = jnp.zeros((Cmid, Lsc - _MARGIN - L), jnp.float32)

    x = x_ref[...]                                                       # (Cin, L)

    # ---- layer1: 1x1 conv (BN scale folded into w1) -> bias -> LeakyReLU(0.1) ----
    h = jnp.dot(w1_ref[...], x, preferred_element_type=jnp.float32)      # (Cmid, L)
    h = h + b1_ref[...]
    h = jnp.where(h > 0, h, 0.1 * h)
    # zero the pre-baked border / rounding lanes so they act as the 3x3 conv's zero padding
    h = h * mask_ref[...]

    # ---- stage h: one lane-aligned, unmasked full-width store (start 128, len % 128 == 0) ----
    hp_ref[:, _MARGIN:_MARGIN + L] = h

    # ---- layer2: 3x3 conv as im2col (9 contiguous shifted slices) + ONE fused MXU dot ----
    base = _MARGIN - Wp - 1
    taps = [hp_ref[:, base + dy * Wp + dx: base + dy * Wp + dx + L]
            for dy in range(3) for dx in range(3)]                       # 9 x (Cmid, L)
    patches = jnp.concatenate(taps, axis=0)                              # (9*Cmid, L)
    out = jnp.dot(w2_ref[...], patches, preferred_element_type=jnp.float32)  # (Cin, L)
    out = out + b2_ref[...]
    out = jnp.where(out > 0, out, 0.1 * out)

    # ---- residual add, lane-dense store ----
    o_ref[...] = (x + out).astype(o_ref.dtype)


def res_layer(x, w1_pt, g1, beta1, mean1, var1, w2_pt, g2, beta2, mean2, var2,
              eps=1e-5):
    """ResLayer forward. x: (N, Cin, H, W) float32 NCHW; PyTorch-layout weights / eval-mode BN."""
    N, Cin, H, W = x.shape
    Cmid = w1_pt.shape[0]
    Hp, Wp = H + 2, W + 2
    LPimg = -(-(Hp * Wp) // 128) * 128          # per-image lane window, multiple of 128

    # v7x has 2 TensorCores: keep 2 parallel grid steps when the batch allows it;
    # otherwise fold the whole batch into one step (v5e/v6e are single-TC anyway).
    nsteps = 2 if (N >= 2 and N % 2 == 0) else 1
    Bt = N // nsteps
    L = Bt * LPimg                               # lanes per grid step (multiple of 128)

    # fold eval-mode BatchNorm: scale into the conv weights, keep only per-channel biases
    s1 = g1 / jnp.sqrt(var1 + eps)
    s2 = g2 / jnp.sqrt(var2 + eps)
    b1 = (beta1 - mean1 * s1).reshape(Cmid, 1).astype(jnp.float32)
    b2 = (beta2 - mean2 * s2).reshape(Cin, 1).astype(jnp.float32)
    w1m = (w1_pt[:, :, 0, 0] * s1[:, None]).astype(jnp.float32)          # (Cmid, Cin)
    w2m = (jnp.transpose(w2_pt, (0, 2, 3, 1)).reshape(Cin, 9 * Cmid)
           * s2[:, None]).astype(jnp.float32)                            # (Cin, 9*Cmid)

    # working layout: per image a zero-bordered (H+2)x(W+2) map, flattened row-major and
    # padded to LPimg lanes; Bt images concatenated along the lane axis per grid step.
    xp = jnp.pad(x, ((0, 0), (0, 0), (1, 1), (1, 1))).reshape(N, Cin, Hp * Wp)
    xp = jnp.pad(xp, ((0, 0), (0, 0), (0, LPimg - Hp * Wp)))
    xw = xp.reshape(nsteps, Bt, Cin, LPimg).transpose(0, 2, 1, 3).reshape(nsteps, Cin, L)

    # interior mask (identical for every image / step)
    m = jnp.zeros((Hp, Wp), jnp.float32).at[1:H + 1, 1:W + 1].set(1.0).reshape(-1)
    m = jnp.pad(m, (0, LPimg - Hp * Wp))
    mask = jnp.tile(m, Bt)[None, :]                                      # (1, L)

    out_w = pl.pallas_call(
        functools.partial(_res_layer_kernel, Wp=Wp),
        out_shape=jax.ShapeDtypeStruct((nsteps, Cin, L), x.dtype),
        grid=(nsteps,),
        in_specs=[
            pl.BlockSpec((pl.Squeezed(), Cin, L), lambda s: (s, 0, 0)),
            pl.BlockSpec((Cmid, Cin), lambda s: (0, 0)),
            pl.BlockSpec((Cmid, 1), lambda s: (0, 0)),
            pl.BlockSpec((Cin, 9 * Cmid), lambda s: (0, 0)),
            pl.BlockSpec((Cin, 1), lambda s: (0, 0)),
            pl.BlockSpec((1, L), lambda s: (0, 0)),
        ],
        out_specs=pl.BlockSpec((pl.Squeezed(), Cin, L), lambda s: (s, 0, 0)),
        scratch_shapes=[pltpu.VMEM((Cmid, L + 2 * _MARGIN), jnp.float32)],
        compiler_params=pltpu.CompilerParams(
            dimension_semantics=("parallel",),       # 2 steps -> both TensorCores on v7x
            vmem_limit_bytes=48 * 1024 * 1024),      # stay under v7x's 64 MiB/TC budget
    )(xw, w1m, b1, w2m, b2, mask)

    # strip working padding: back to NCHW interior
    out = out_w.reshape(nsteps, Cin, Bt, LPimg).transpose(0, 2, 1, 3).reshape(N, Cin, LPimg)
    return out[:, :, :Hp * Wp].reshape(N, Cin, Hp, Wp)[:, :, 1:H + 1, 1:W + 1]


# ------------------------- pure-JAX reference (NCHW) -------------------------
def _bn(x, g, b, m, v, eps=1e-5):
    sh = (1, -1, 1, 1)
    return (x - m.reshape(sh)) / jnp.sqrt(v.reshape(sh) + eps) * g.reshape(sh) + b.reshape(sh)


def _lrelu(x):
    return jnp.where(x > 0, x, 0.1 * x)


def ref_res_layer(x, w1_pt, g1, beta1, mean1, var1, w2_pt, g2, beta2, mean2, var2,
                  eps=1e-5):
    conv = lambda y, w, p: lax.conv_general_dilated(
        y, w, window_strides=(1, 1), padding=((p, p), (p, p)),
        dimension_numbers=('NCHW', 'OIHW', 'NCHW'))
    h = _lrelu(_bn(conv(x, w1_pt, 0), g1, beta1, mean1, var1, eps))
    o = _lrelu(_bn(conv(h, w2_pt, 1), g2, beta2, mean2, var2, eps))
    return x + o


if __name__ == "__main__":
    key = jax.random.PRNGKey(0)
    N, Cin, H, W = 2, 4, 16, 16
    Cmid = Cin // 2
    ks = jax.random.split(key, 11)

    x = jax.random.normal(ks[0], (N, Cin, H, W), jnp.float32)
    w1_pt = 0.5 * jax.random.normal(ks[1], (Cmid, Cin, 1, 1), jnp.float32)
    w2_pt = 0.3 * jax.random.normal(ks[2], (Cin, Cmid, 3, 3), jnp.float32)
    g1 = 1.0 + 0.1 * jax.random.normal(ks[3], (Cmid,), jnp.float32)
    beta1 = 0.1 * jax.random.normal(ks[4], (Cmid,), jnp.float32)
    mean1 = 0.05 * jax.random.normal(ks[5], (Cmid,), jnp.float32)
    var1 = jnp.abs(1.0 + 0.1 * jax.random.normal(ks[6], (Cmid,), jnp.float32))
    g2 = 1.0 + 0.1 * jax.random.normal(ks[7], (Cin,), jnp.float32)
    beta2 = 0.1 * jax.random.normal(ks[8], (Cin,), jnp.float32)
    mean2 = 0.05 * jax.random.normal(ks[9], (Cin,), jnp.float32)
    var2 = jnp.abs(1.0 + 0.1 * jax.random.normal(ks[10], (Cin,), jnp.float32))

    out = res_layer(x, w1_pt, g1, beta1, mean1, var1,
                    w2_pt, g2, beta2, mean2, var2)
    out = jax.block_until_ready(out)

    ref = ref_res_layer(x, w1_pt, g1, beta1, mean1, var1,
                        w2_pt, g2, beta2, mean2, var2)
    assert out.shape == (N, Cin, H, W)
    assert jnp.allclose(out, ref, atol=1e-4, rtol=1e-4), (
        "mismatch vs reference, max abs err = %e" % float(jnp.max(jnp.abs(out - ref))))
    print("KERNEL_OK")
</pallas_src>

<mosaic_0001>
module attributes {stable_mosaic.version = 11 : i64} {
  func.func @_res_layer_kernel(%arg0: i32, %arg1: memref<1x4x384xf32, #tpu.memory_space<vmem>>, %arg2: memref<2x4xf32, #tpu.memory_space<vmem>>, %arg3: memref<2x1xf32, #tpu.memory_space<vmem>>, %arg4: memref<4x18xf32, #tpu.memory_space<vmem>>, %arg5: memref<4x1xf32, #tpu.memory_space<vmem>>, %arg6: memref<1x384xf32, #tpu.memory_space<vmem>>, %arg7: memref<1x4x384xf32, #tpu.memory_space<vmem>>, %arg8: memref<2x640xf32, #tpu.memory_space<vmem>>) attributes {dimension_semantics = [#tpu.dimension_semantics<parallel>], iteration_bounds = array<i64: 2>, scalar_prefetch = 0 : i64, scratch_operands = 1 : i64, tpu.core_type = #tpu.core_type<tc>, window_params = [{transform_indices = @transform_0, window_bounds = array<i64: 1, 4, 384>}, {pipeline_mode = #tpu.pipeline_mode<synchronous>, transform_indices = @transform_1, window_bounds = array<i64: 2, 4>}, {pipeline_mode = #tpu.pipeline_mode<synchronous>, transform_indices = @transform_2, window_bounds = array<i64: 2, 1>}, {pipeline_mode = #tpu.pipeline_mode<synchronous>, transform_indices = @transform_3, window_bounds = array<i64: 4, 18>}, {pipeline_mode = #tpu.pipeline_mode<synchronous>, transform_indices = @transform_4, window_bounds = array<i64: 4, 1>}, {pipeline_mode = #tpu.pipeline_mode<synchronous>, transform_indices = @transform_5, window_bounds = array<i64: 1, 384>}, {transform_indices = @transform_6, window_bounds = array<i64: 1, 4, 384>}]} {
    %c0_i32 = arith.constant 0 : i32
    %0 = arith.cmpi eq, %arg0, %c0_i32 : i32
    %1 = arith.extui %0 : i1 to i32
    %c0_i32_0 = arith.constant 0 : i32
    %2 = arith.cmpi ne, %1, %c0_i32_0 : i32
    scf.if %2 {
      %cst_32 = arith.constant 0.000000e+00 : f32
      %43 = vector.broadcast %cst_32 : f32 to vector<2x128xf32>
      %c0_33 = arith.constant 0 : index
      %c0_34 = arith.constant 0 : index
      %44 = vector.load %arg8[%c0_33, %c0_34] : memref<2x640xf32, #tpu.memory_space<vmem>>, vector<2x128xf32>
      tpu.vector_store %arg8[%c0_33, %c0_34], %43 {strides = array<i32>} : memref<2x640xf32, #tpu.memory_space<vmem>>, vector<2x128xf32>,
      %cst_35 = arith.constant 0.000000e+00 : f32
      %45 = vector.broadcast %cst_35 : f32 to vector<2x128xf32>
      %c0_36 = arith.constant 0 : index
      %c512 = arith.constant 512 : index
      %46 = vector.load %arg8[%c0_36, %c512] : memref<2x640xf32, #tpu.memory_space<vmem>>, vector<2x128xf32>
      tpu.vector_store %arg8[%c0_36, %c512], %45 {strides = array<i32>} : memref<2x640xf32, #tpu.memory_space<vmem>>, vector<2x128xf32>,
    } else {
    }
    %c0 = arith.constant 0 : index
    %c0_1 = arith.constant 0 : index
    %c0_2 = arith.constant 0 : index
    %3 = vector.load %arg1[%c0, %c0_1, %c0_2] : memref<1x4x384xf32, #tpu.memory_space<vmem>>, vector<1x4x384xf32>
    %4 = vector.shape_cast %3 : vector<1x4x384xf32> to vector<4x384xf32>
    %c0_3 = arith.constant 0 : index
    %c0_4 = arith.constant 0 : index
    %5 = vector.load %arg2[%c0_3, %c0_4] : memref<2x4xf32, #tpu.memory_space<vmem>>, vector<2x4xf32>
    %cst = arith.constant dense<0.000000e+00> : vector<2x384xf32>
    %6 = tpu.matmul %5, %4, %cst {dimension_numbers = #tpu.dot_dimension_numbers<[1], [0], [0], [1], [0, 0, 1, 1], [], []>} : vector<2x4xf32>, vector<4x384xf32>, vector<2x384xf32> -> vector<2x384xf32>
    %c0_5 = arith.constant 0 : index
    %c0_6 = arith.constant 0 : index
    %7 = vector.load %arg3[%c0_5, %c0_6] : memref<2x1xf32, #tpu.memory_space<vmem>>, vector<2x1xf32>
    %8 = vector.broadcast %7 : vector<2x1xf32> to vector<2x384xf32>
    %9 = arith.addf %6, %8 : vector<2x384xf32>
    %cst_7 = arith.constant 0.000000e+00 : f32
    %10 = vector.broadcast %cst_7 : f32 to vector<2x384xf32>
    %11 = arith.cmpf ogt, %9, %10 : vector<2x384xf32>
    %cst_8 = arith.constant 1.000000e-01 : f32
    %12 = vector.broadcast %cst_8 : f32 to vector<2x384xf32>
    %13 = arith.mulf %12, %9 : vector<2x384xf32>
    %14 = arith.select %11, %9, %13 : vector<2x384xi1>, vector<2x384xf32>
    %c0_9 = arith.constant 0 : index
    %c0_10 = arith.constant 0 : index
    %15 = vector.load %arg6[%c0_9, %c0_10] : memref<1x384xf32, #tpu.memory_space<vmem>>, vector<1x384xf32>
    %16 = vector.broadcast %15 : vector<1x384xf32> to vector<2x384xf32>
    %17 = arith.mulf %14, %16 : vector<2x384xf32>
    %c0_11 = arith.constant 0 : index
    %c128 = arith.constant 128 : index
    %18 = vector.load %arg8[%c0_11, %c128] : memref<2x640xf32, #tpu.memory_space<vmem>>, vector<2x384xf32>
    tpu.vector_store %arg8[%c0_11, %c128], %17 {strides = array<i32>} : memref<2x640xf32, #tpu.memory_space<vmem>>, vector<2x384xf32>,
    %c0_12 = arith.constant 0 : index
    %c109 = arith.constant 109 : index
    %19 = vector.load %arg8[%c0_12, %c109] : memref<2x640xf32, #tpu.memory_space<vmem>>, vector<2x384xf32>
    %c0_13 = arith.constant 0 : index
    %c110 = arith.constant 110 : index
    %20 = vector.load %arg8[%c0_13, %c110] : memref<2x640xf32, #tpu.memory_space<vmem>>, vector<2x384xf32>
    %c0_14 = arith.constant 0 : index
    %c111 = arith.constant 111 : index
    %21 = vector.load %arg8[%c0_14, %c111] : memref<2x640xf32, #tpu.memory_space<vmem>>, vector<2x384xf32>
    %c0_15 = arith.constant 0 : index
    %c127 = arith.constant 127 : index
    %22 = vector.load %arg8[%c0_15, %c127] : memref<2x640xf32, #tpu.memory_space<vmem>>, vector<2x384xf32>
    %c0_16 = arith.constant 0 : index
    %c128_17 = arith.constant 128 : index
    %23 = vector.load %arg8[%c0_16, %c128_17] : memref<2x640xf32, #tpu.memory_space<vmem>>, vector<2x384xf32>
    %c0_18 = arith.constant 0 : index
    %c129 = arith.constant 129 : index
    %24 = vector.load %arg8[%c0_18, %c129] : memref<2x640xf32, #tpu.memory_space<vmem>>, vector<2x384xf32>
    %c0_19 = arith.constant 0 : index
    %c145 = arith.constant 145 : index
    %25 = vector.load %arg8[%c0_19, %c145] : memref<2x640xf32, #tpu.memory_space<vmem>>, vector<2x384xf32>
    %c0_20 = arith.constant 0 : index
    %c146 = arith.constant 146 : index
    %26 = vector.load %arg8[%c0_20, %c146] : memref<2x640xf32, #tpu.memory_space<vmem>>, vector<2x384xf32>
    %c0_21 = arith.constant 0 : index
    %c147 = arith.constant 147 : index
    %27 = vector.load %arg8[%c0_21, %c147] : memref<2x640xf32, #tpu.memory_space<vmem>>, vector<2x384xf32>
    %28 = tpu.concatenate %19, %20, %21, %22, %23, %24, %25, %26, %27 in 0 : vector<2x384xf32>, vector<2x384xf32>, vector<2x384xf32>, vector<2x384xf32>, vector<2x384xf32>, vector<2x384xf32>, vector<2x384xf32>, vector<2x384xf32>, vector<2x384xf32> -> vector<18x384xf32>
    %c0_22 = arith.constant 0 : index
    %c0_23 = arith.constant 0 : index
    %29 = vector.load %arg4[%c0_22, %c0_23] : memref<4x18xf32, #tpu.memory_space<vmem>>, vector<4x18xf32>
    %cst_24 = arith.constant dense<0.000000e+00> : vector<4x384xf32>
    %30 = tpu.matmul %29, %28, %cst_24 {dimension_numbers = #tpu.dot_dimension_numbers<[1], [0], [0], [1], [0, 0, 1, 1], [], []>} : vector<4x18xf32>, vector<18x384xf32>, vector<4x384xf32> -> vector<4x384xf32>
    %c0_25 = arith.constant 0 : index
    %c0_26 = arith.constant 0 : index
    %31 = vector.load %arg5[%c0_25, %c0_26] : memref<4x1xf32, #tpu.memory_space<vmem>>, vector<4x1xf32>
    %32 = vector.broadcast %31 : vector<4x1xf32> to vector<4x384xf32>
    %33 = arith.addf %30, %32 : vector<4x384xf32>
    %cst_27 = arith.constant 0.000000e+00 : f32
    %34 = vector.broadcast %cst_27 : f32 to vector<4x384xf32>
    %35 = arith.cmpf ogt, %33, %34 : vector<4x384xf32>
    %cst_28 = arith.constant 1.000000e-01 : f32
    %36 = vector.broadcast %cst_28 : f32 to vector<4x384xf32>
    %37 = arith.mulf %36, %33 : vector<4x384xf32>
    %38 = arith.select %35, %33, %37 : vector<4x384xi1>, vector<4x384xf32>
    %39 = arith.addf %4, %38 : vector<4x384xf32>
    %c0_29 = arith.constant 0 : index
    %c0_30 = arith.constant 0 : index
    %c0_31 = arith.constant 0 : index
    %40 = vector.load %arg7[%c0_29, %c0_30, %c0_31] : memref<1x4x384xf32, #tpu.memory_space<vmem>>, vector<1x4x384xf32>
    %41 = vector.shape_cast %40 : vector<1x4x384xf32> to vector<4x384xf32>
    %42 = vector.shape_cast %39 : vector<4x384xf32> to vector<1x4x384xf32>
    tpu.vector_store %arg7[%c0_29, %c0_30, %c0_31], %42 {strides = array<i32>} : memref<1x4x384xf32, #tpu.memory_space<vmem>>, vector<1x4x384xf32>,
    return
  }
  func.func @transform_0(%arg0: i32) -> (i32, i32, i32) {
    %c0_i32 = arith.constant 0 : i32
    %c0_i32_0 = arith.constant 0 : i32
    %c0_i32_1 = arith.constant 0 : i32
    return %arg0, %c0_i32, %c0_i32_0 : i32, i32, i32
  }
  func.func @transform_1(%arg0: i32) -> (i32, i32) {
    %c0_i32 = arith.constant 0 : i32
    %c0_i32_0 = arith.constant 0 : i32
    %c0_i32_1 = arith.constant 0 : i32
    return %c0_i32, %c0_i32_0 : i32, i32
  }
  func.func @transform_2(%arg0: i32) -> (i32, i32) {
    %c0_i32 = arith.constant 0 : i32
    %c0_i32_0 = arith.constant 0 : i32
    %c0_i32_1 = arith.constant 0 : i32
    return %c0_i32, %c0_i32_0 : i32, i32
  }
  func.func @transform_3(%arg0: i32) -> (i32, i32) {
    %c0_i32 = arith.constant 0 : i32
    %c0_i32_0 = arith.constant 0 : i32
    %c0_i32_1 = arith.constant 0 : i32
    return %c0_i32, %c0_i32_0 : i32, i32
  }
  func.func @transform_4(%arg0: i32) -> (i32, i32) {
    %c0_i32 = arith.constant 0 : i32
    %c0_i32_0 = arith.constant 0 : i32
    %c0_i32_1 = arith.constant 0 : i32
    return %c0_i32, %c0_i32_0 : i32, i32
  }
  func.func @transform_5(%arg0: i32) -> (i32, i32) {
    %c0_i32 = arith.constant 0 : i32
    %c0_i32_0 = arith.constant 0 : i32
    %c0_i32_1 = arith.constant 0 : i32
    return %c0_i32, %c0_i32_0 : i32, i32
  }
  func.func @transform_6(%arg0: i32) -> (i32, i32, i32) {
    %c0_i32 = arith.constant 0 : i32
    %c0_i32_0 = arith.constant 0 : i32
    %c0_i32_1 = arith.constant 0 : i32
    return %arg0, %c0_i32, %c0_i32_0 : i32, i32, i32
  }
}

</mosaic_0001>

<llo_original>
// kernel: tpu_custom_call.1
$region0: #{tpu_custom_call.1}
  #allocation0 [shape = 'u32[]', space=smem, size = 0x4, offset = 0x4, fixed_abs, tag = 'smem constant byte address 0x4 - core index']
  #allocation1 [shape = 'u32[144,128]{1,0:T(1,128)}', space=vmem, size = 0x12000, scoped, tag = 'internal scratch']
  #allocation2 [shape = 'f32[2,640]{1,0:T(2,128)}', space=vmem, size = 0x1400, scoped, tag = 'scratch operand']
  %s0 = inlined_call_operand.hbm [shape: f32[2,4,384], index: 0, kind: input, shape index: {}]
  %s1 = inlined_call_operand.vmem [shape: f32[2,4], index: 1, kind: input, shape index: {}]
  %s2 = inlined_call_operand.vmem [shape: f32[2,1], index: 2, kind: input, shape index: {}]
  %s3 = inlined_call_operand.vmem [shape: f32[4,18], index: 3, kind: input, shape index: {}]
  %s4 = inlined_call_operand.vmem [shape: f32[4,1], index: 4, kind: input, shape index: {}]
  %s5 = inlined_call_operand.vmem [shape: f32[1,384], index: 5, kind: input, shape index: {}]
  %s6 = inlined_call_operand.hbm [shape: f32[2,4,384], index: 6, kind: output, shape index: {}]
  %s7 = sld [smem:[#allocation0]]
  $region65: #{tpu_custom_call.1} parent=0
    _
  %s9 = ssub.s32 1, %s7
  %s10 = scalar_select 0, %s9, %s7
  $region1: #{tpu_custom_call.1} parent=0
    #allocation3 [shape = 'u8[12288]{0}', space=vmem, size = 0x3000, scoped, tag = 'input window, operand 0']
    #allocation4 [shape = 's32[2]{0}', space=sflag, size = 0x8, scoped, tag = 'scoped memory for tpu_custom_call.1']
    #allocation5 [shape = 's32[2]{0}', space=sflag, size = 0x8, scoped, tag = 'scoped memory for tpu_custom_call.1']
    #allocation6 [shape = 'u8[12288]{0}', space=vmem, size = 0x3000, scoped, tag = 'output window, operand 0']
    %11 = vsyncpa [#allocation4], 0
    %s12 = scalar_lea.sflag [#allocation4], 1
    %13 = vsyncpa %s12, 0
    %14 = vsyncpa [#allocation5], 0
    %s15 = scalar_lea.sflag [#allocation5], 1
    %16 = vsyncpa %s15, 0
    loop: start=0, step=1, limit=4
    $region2: #{tpu_custom_call.1} parent=1 // loop_pre_header
      _
    $region3: #{tpu_custom_call.1} parent=1 // loop_header
      %s18 = sphi 0, %s22
      %p19 = scmp.ge.s32.totalorder %s18, 4
      %s28 = sphi 0, %s30
      %s31 = sphi 0, %s28
      %s32 = sphi 0, %s31
      %s48 = sphi 0, %s32
      %s52 = sphi 0, %s52
      %s54 = sphi 0, %s52
      %s55 = sphi 0, %s54
      %s69 = sphi 0, %s55
      %s73 = sphi 0, %s73
      %s75 = sphi 0, %s73
      %s76 = sphi 0, %s75
      %s90 = sphi 0, %s76
      %s94 = sphi 0, %s94
      %s96 = sphi 0, %s94
      %s97 = sphi 0, %s96
      %s111 = sphi 0, %s97
      %s115 = sphi 0, %s115
      %s117 = sphi 0, %s115
      %s118 = sphi 0, %s117
      %s132 = sphi 0, %s118
      %s136 = sphi 0, %s136
      %s138 = sphi 0, %s136
      %s139 = sphi 0, %s138
      %s153 = sphi 0, %s139
      %s159 = sphi 0, %s161
      %s162 = sphi 0, %s159
      %s163 = sphi 0, %s162
      %s179 = sphi 0, %s163
    $region4: #{tpu_custom_call.1} parent=1 // loop_header_branch
      %21 = sbr.rel (%p19) target = $region8
    $region5: #{tpu_custom_call.1} parent=1 // loop_body
      %s23 = ssub.s32 %s18, 1
      %s24 = ssub.s32 %s18, 2
      %s25 = sadd.s32 %s18, 1
      %s26 = ssub.s32 %s18, %s25
      %p27 = scmp.eq.s32.totalorder %s26, 0
      %s29 = sadd.s32 %s28, 1
      %s30 = scalar_select %p27, %s28, %s29
      %p33 = pneg %p27
      %p34 = scmp.eq.s32.totalorder %s18, 1
      %p35 = por %p33, %p34
      %p36 = scmp.ne.s32.totalorder %s28, %s31
      %p37 = scmp.eq.s32.totalorder %s18, 0
      %p38 = por %p36, %p37
      %p39 = scmp.ne.s32.totalorder %s28, %s31
      %p40 = scmp.eq.s32.totalorder %s23, 1
      %p41 = por %p39, %p40
      %p42 = scmp.ne.s32.totalorder %s31, %s32
      %p43 = scmp.eq.s32.totalorder %s23, 0
      %p44 = por %p42, %p43
      %p45 = scmp.ne.s32.totalorder %s31, %s32
      %p46 = scmp.eq.s32.totalorder %s24, 1
      %p47 = por %p45, %p46
      %p49 = scmp.ne.s32.totalorder %s32, %s48
      %p50 = scmp.eq.s32.totalorder %s24, 0
      %p51 = por %p49, %p50
      %s53 = sadd.s32 %s52, 1
      %p56 = scmp.eq.s32.totalorder %s18, 1
      %p57 = scmp.ne.s32.totalorder %s52, %s54
      %p58 = scmp.eq.s32.totalorder %s18, 0
      %p59 = por %p57, %p58
      %p60 = scmp.ne.s32.totalorder %s52, %s54
      %p61 = scmp.eq.s32.totalorder %s23, 1
      %p62 = por %p60, %p61
      %p63 = scmp.ne.s32.totalorder %s54, %s55
      %p64 = scmp.eq.s32.totalorder %s23, 0
      %p65 = por %p63, %p64
      %p66 = scmp.ne.s32.totalorder %s54, %s55
      %p67 = scmp.eq.s32.totalorder %s24, 1
      %p68 = por %p66, %p67
      %p70 = scmp.ne.s32.totalorder %s55, %s69
      %p71 = scmp.eq.s32.totalorder %s24, 0
      %p72 = por %p70, %p71
      %s74 = sadd.s32 %s73, 1
      %p77 = scmp.eq.s32.totalorder %s18, 1
      %p78 = scmp.ne.s32.totalorder %s73, %s75
      %p79 = scmp.eq.s32.totalorder %s18, 0
      %p80 = por %p78, %p79
      %p81 = scmp.ne.s32.totalorder %s73, %s75
      %p82 = scmp.eq.s32.totalorder %s23, 1
      %p83 = por %p81, %p82
      %p84 = scmp.ne.s32.totalorder %s75, %s76
      %p85 = scmp.eq.s32.totalorder %s23, 0
      %p86 = por %p84, %p85
      %p87 = scmp.ne.s32.totalorder %s75, %s76
      %p88 = scmp.eq.s32.totalorder %s24, 1
      %p89 = por %p87, %p88
      %p91 = scmp.ne.s32.totalorder %s76, %s90
      %p92 = scmp.eq.s32.totalorder %s24, 0
      %p93 = por %p91, %p92
      %s95 = sadd.s32 %s94, 1
      %p98 = scmp.eq.s32.totalorder %s18, 1
      %p99 = scmp.ne.s32.totalorder %s94, %s96
      %p100 = scmp.eq.s32.totalorder %s18, 0
      %p101 = por %p99, %p100
      %p102 = scmp.ne.s32.totalorder %s94, %s96
      %p103 = scmp.eq.s32.totalorder %s23, 1
      %p104 = por %p102, %p103
      %p105 = scmp.ne.s32.totalorder %s96, %s97
      %p106 = scmp.eq.s32.totalorder %s23, 0
      %p107 = por %p105, %p106
      %p108 = scmp.ne.s32.totalorder %s96, %s97
      %p109 = scmp.eq.s32.totalorder %s24, 1
      %p110 = por %p108, %p109
      %p112 = scmp.ne.s32.totalorder %s97, %s111
      %p113 = scmp.eq.s32.totalorder %s24, 0
      %p114 = por %p112, %p113
      %s116 = sadd.s32 %s115, 1
      %p119 = scmp.eq.s32.totalorder %s18, 1
      %p120 = scmp.ne.s32.totalorder %s115, %s117
      %p121 = scmp.eq.s32.totalorder %s18, 0
      %p122 = por %p120, %p121
      %p123 = scmp.ne.s32.totalorder %s115, %s117
      %p124 = scmp.eq.s32.totalorder %s23, 1
      %p125 = por %p123, %p124
      %p126 = scmp.ne.s32.totalorder %s117, %s118
      %p127 = scmp.eq.s32.totalorder %s23, 0
      %p128 = por %p126, %p127
      %p129 = scmp.ne.s32.totalorder %s117, %s118
      %p130 = scmp.eq.s32.totalorder %s24, 1
      %p131 = por %p129, %p130
      %p133 = scmp.ne.s32.totalorder %s118, %s132
      %p134 = scmp.eq.s32.totalorder %s24, 0
      %p135 = por %p133, %p134
      %s137 = sadd.s32 %s136, 1
      %p140 = scmp.eq.s32.totalorder %s18, 1
      %p141 = scmp.ne.s32.totalorder %s136, %s138
      %p142 = scmp.eq.s32.totalorder %s18, 0
      %p143 = por %p141, %p142
      %p144 = scmp.ne.s32.totalorder %s136, %s138
      %p145 = scmp.eq.s32.totalorder %s23, 1
      %p146 = por %p144, %p145
      %p147 = scmp.ne.s32.totalorder %s138, %s139
      %p148 = scmp.eq.s32.totalorder %s23, 0
      %p149 = por %p147, %p148
      %p150 = scmp.ne.s32.totalorder %s138, %s139
      %p151 = scmp.eq.s32.totalorder %s24, 1
      %p152 = por %p150, %p151
      %p154 = scmp.ne.s32.totalorder %s139, %s153
      %p155 = scmp.eq.s32.totalorder %s24, 0
      %p156 = por %p154, %p155
      %s157 = ssub.s32 %s18, %s25
      %p158 = scmp.eq.s32.totalorder %s157, 0
      %s160 = sadd.s32 %s159, 1
      %s161 = scalar_select %p158, %s159, %s160
      %p164 = pneg %p158
      %p165 = scmp.eq.s32.totalorder %s18, 1
      %p166 = por %p164, %p165
      %p167 = scmp.ne.s32.totalorder %s159, %s162
      %p168 = scmp.eq.s32.totalorder %s18, 0
      %p169 = por %p167, %p168
      %p170 = scmp.ne.s32.totalorder %s159, %s162
      %p171 = scmp.eq.s32.totalorder %s23, 1
      %p172 = por %p170, %p171
      %p173 = scmp.ne.s32.totalorder %s162, %s163
      %p174 = scmp.eq.s32.totalorder %s23, 0
      %p175 = por %p173, %p174
      %p176 = scmp.ne.s32.totalorder %s162, %s163
      %p177 = scmp.eq.s32.totalorder %s24, 1
      %p178 = por %p176, %p177
      %p180 = scmp.ne.s32.totalorder %s163, %s179
      %p181 = scmp.eq.s32.totalorder %s24, 0
      %p182 = por %p180, %p181
      %p183 = scmp.le.s32.totalorder 1, %s18
      %p184 = scmp.lt.s32.totalorder %s18, 3
      %p185 = pnand %p183, %p184
      %p186 = pneg %p185
      // Predicated region
      $region9: #{tpu_custom_call.1} parent=5 // pred_check
        _
      $region10: #{tpu_custom_call.1} parent=5 // pred_check_branch
        %188 = sbr.rel (%p185) target = $region12
      $region11: #{tpu_custom_call.1} parent=5 // pred_region
        %s189 = ssub.s32 %s18, 1
        // Predicated region
        $region13: #{tpu_custom_call.1} parent=11 // pred_check
          %p190 = pneg %p65
        $region14: #{tpu_custom_call.1} parent=11 // pred_check_branch
          %192 = sbr.rel (%p190) target = $region16
        $region15: #{tpu_custom_call.1} parent=11 // pred_region
          _
        $region16: #{tpu_custom_call.1} parent=11 // pred_fallthru
          _
        // Predicated region
        $region17: #{tpu_custom_call.1} parent=11 // pred_check
          %p193 = pneg %p86
        $region18: #{tpu_custom_call.1} parent=11 // pred_check_branch
          %195 = sbr.rel (%p193) target = $region20
        $region19: #{tpu_custom_call.1} parent=11 // pred_region
          _
        $region20: #{tpu_custom_call.1} parent=11 // pred_fallthru
          _
        // Predicated region
        $region21: #{tpu_custom_call.1} parent=11 // pred_check
          %p196 = pneg %p107
        $region22: #{tpu_custom_call.1} parent=11 // pred_check_branch
          %198 = sbr.rel (%p196) target = $region24
        $region23: #{tpu_custom_call.1} parent=11 // pred_region
          _
        $region24: #{tpu_custom_call.1} parent=11 // pred_fallthru
          _
        // Predicated region
        $region25: #{tpu_custom_call.1} parent=11 // pred_check
          %p199 = pneg %p128
        $region26: #{tpu_custom_call.1} parent=11 // pred_check_branch
          %201 = sbr.rel (%p199) target = $region28
        $region27: #{tpu_custom_call.1} parent=11 // pred_region
          _
        $region28: #{tpu_custom_call.1} parent=11 // pred_fallthru
          _
        // Predicated region
        $region29: #{tpu_custom_call.1} parent=11 // pred_check
          %p202 = pneg %p149
        $region30: #{tpu_custom_call.1} parent=11 // pred_check_branch
          %204 = sbr.rel (%p202) target = $region32
        $region31: #{tpu_custom_call.1} parent=11 // pred_region
          _
        $region32: #{tpu_custom_call.1} parent=11 // pred_fallthru
          _
      $region12: #{tpu_custom_call.1} parent=5 // pred_fallthru
        _
      %p205 = scmp.lt.s32.totalorder %s18, 2
      // Predicated region
      $region33: #{tpu_custom_call.1} parent=5 // pred_check
        %p206 = pneg %p205
      $region34: #{tpu_custom_call.1} parent=5 // pred_check_branch
        %208 = sbr.rel (%p206) target = $region36
      $region35: #{tpu_custom_call.1} parent=5 // pred_region
        // Predicated region
        $region37: #{tpu_custom_call.1} parent=35 // pred_check
          %p209 = pneg %p38
        $region38: #{tpu_custom_call.1} parent=35 // pred_check_branch
          %211 = sbr.rel (%p209) target = $region40
        $region39: #{tpu_custom_call.1} parent=35 // pred_region
          %s212 = sand.u32 %s28, 1
          %s213 = scalar_lea.sflag [#allocation4], %s212
          %s214 = sand.u32 %s28, 1
          %s215 = smul.addr %s214, 12
          %s216 = scalar_lea.vmem [#allocation3], %s215
          %s218 = ssub.s32 192, 192
          %219 = vsyncadd %s213, %s218
          %s220 = smul.addr %s18, 3
          %s221 = smul.addr %s220, 64
          %s222 = scalar_lea.hbm %s0, %s221
          %s224 = sshll.u32 %s216, 4
          %s225 = int_to_ptr.vmem [resolvable:$true] %s224
          %227 = dma.hbm_to_vmem [thread:$0]  %s222, 192, %s225, %s213
        $region40: #{tpu_custom_call.1} parent=35 // pred_fallthru
          _
      $region36: #{tpu_custom_call.1} parent=5 // pred_fallthru
        _
      %p228 = scmp.le.s32.totalorder 1, %s18
      %p229 = scmp.lt.s32.totalorder %s18, 3
      %p230 = pnand %p228, %p229
      %p231 = pneg %p230
      // Predicated region
      $region41: #{tpu_custom_call.1} parent=5 // pred_check
        _
      $region42: #{tpu_custom_call.1} parent=5 // pred_check_branch
        %233 = sbr.rel (%p230) target = $region44
      $region43: #{tpu_custom_call.1} parent=5 // pred_region
        %s234 = ssub.s32 %s18, 1
        %s235 = sand.u32 %s31, 1
        %s236 = scalar_lea.sflag [#allocation4], %s235
        %s237 = sand.u32 %s31, 1
        %s238 = smul.addr %s237, 12
        %s239 = scalar_lea.vmem [#allocation3], %s238
        // Predicated region
        $region45: #{tpu_custom_call.1} parent=43 // pred_check
          %p240 = pneg %p44
        $region46: #{tpu_custom_call.1} parent=43 // pred_check_branch
          %242 = sbr.rel (%p240) target = $region48
        $region47: #{tpu_custom_call.1} parent=43 // pred_region
          %243 = dma.done %s236, 192
        $region48: #{tpu_custom_call.1} parent=43 // pred_fallthru
          _
        %s244 = sand.u32 %s31, 1
        %s245 = scalar_lea.sflag [#allocation4], %s244
        %s246 = sand.u32 %s31, 1
        %s247 = smul.addr %s246, 12
        %s248 = scalar_lea.vmem [#allocation3], %s247
        %p249 = pneg %p44
        %p250 = pneg %p41
        %p251 = pneg %p65
        %p252 = pneg %p62
        %p253 = pneg %p86
        %p254 = pneg %p83
        %p255 = pneg %p107
        %p256 = pneg %p104
        %p257 = pneg %p128
        %p258 = pneg %p125
        %p259 = pneg %p149
        %p260 = pneg %p146
        %p261 = pneg %p175
        %p262 = pneg %p172
        %s263 = sand.u32 %s162, 1
        %s264 = scalar_lea.sflag [#allocation5], %s263
        %s265 = sand.u32 %s162, 1
        %s266 = smul.addr %s265, 12
        %s267 = scalar_lea.vmem [#allocation6], %s266
        %p268 = scmp.eq.s32.totalorder %s23, 0
        // Predicated region
        $region49: #{tpu_custom_call.1} parent=43 // pred_check
          %p269 = pneg %p268
        $region50: #{tpu_custom_call.1} parent=43 // pred_check_branch
          %271 = sbr.rel (%p269) target = $region52
        $region51: #{tpu_custom_call.1} parent=43 // pred_region
          %272 = vst [vmem:[#allocation2] sm:$0x3] 0.0
          %273 = vst [vmem:[#allocation2 + $0x8] sm:$0x3] 0.0
        $region52: #{tpu_custom_call.1} parent=43 // pred_fallthru
          _
        %v274 = vld [vmem:[%s239] sm:$0xff]
        %v275 = vld [vmem:[%s239 + $0x8] sm:$0xf]
        %v276 = vld [vmem:[%s1] sm:$0x3]
        %v277 = vld [vmem:[%s2] sm:$0x3]
        %279 = vset.pattern.permute.xlu0 0
        %280 = vperm.xlu0 %279, %v277
        %v281 = vpop.permute.xlu0 %280
        %v285 = vcombine.high %v274, %v274
        %vm286 = vcmask 31744
        %v288 = vsel %vm286, %v276, 0
        %vm290 = vcmask 1043456
        %v291 = vsel %vm290, %v274, 0
        %v293 = vsel %vm290, %v285, 0
        %v295 = vsel %vm290, %v275, 0
        %297 = vmatprep.subr.mxu0 %v293
        %298 = vmatpush1.msra.mxu0 %v291
        %299 = vmatprep.subr.mxu0 0.0
        %300 = vmatpush1.msra.mxu0 0.0
        %301 = vmatprep.subr.mxu0 0.0
        %302 = vmatpush1.msra.mxu0 0.0
        %303 = vmatprep.subr.mxu0 0.0
        %304 = vmatpush1.msra.mxu0 0.0
        %305 = vmatprep.subr.mxu0 0.0
        %306 = vmatpush1.msra.mxu0 0.0
        %307 = vmatprep.subr.mxu0 0.0
        %308 = vmatpush1.msra.mxu0 0.0
        %309 = vmatprep.subr.mxu0 0.0
        %310 = vmatpush1.msra.mxu0 0.0
        %311 = vmatprep.subr.mxu0 0.0
        %312 = vmatpush1.msra.mxu0 0.0
        %313 = vmatprep.subr.mxu0 0.0
        %314 = vmatpush1.msra.mxu0 0.0
        %315 = vmatprep.subr.mxu0 0.0
        %316 = vmatpush1.msra.mxu0 0.0
        %317 = vmatprep.subr.mxu0 0.0
        %318 = vmatpush1.msra.mxu0 0.0
        %319 = vmatprep.subr.mxu0 0.0
        %320 = vmatpush1.msra.mxu0 0.0
        %321 = vmatprep.subr.mxu0 0.0
        %322 = vmatpush1.msra.mxu0 0.0
        %323 = vmatprep.subr.mxu0 0.0
        %324 = vmatpush1.msra.mxu0 0.0
        %325 = vmatprep.subr.mxu0 0.0
        %326 = vmatpush1.msra.mxu0 0.0
        %327 = vmatprep.subr.mxu0 0.0
        %328 = vmatpush1.msra.mxu0 0.0
        %329 = vmatprep.subr.mxu0 0.0
        %330 = vmatpush1.msra.mxu0 0.0
        %331 = vmatprep.subr.mxu0 0.0
        %332 = vmatpush1.msra.mxu0 0.0
        %333 = vmatprep.subr.mxu0 0.0
        %334 = vmatpush1.msra.mxu0 0.0
        %335 = vmatprep.subr.mxu0 0.0
        %336 = vmatpush1.msra.mxu0 0.0
        %337 = vmatprep.subr.mxu0 0.0
        %338 = vmatpush1.msra.mxu0 0.0
        %339 = vmatprep.subr.mxu0 0.0
        %340 = vmatpush1.msra.mxu0 0.0
        %341 = vmatprep.subr.mxu0 0.0
        %342 = vmatpush1.msra.mxu0 0.0
        %343 = vmatprep.subr.mxu0 0.0
        %344 = vmatpush1.msra.mxu0 0.0
        %345 = vmatprep.subr.mxu0 0.0
        %346 = vmatpush1.msra.mxu0 0.0
        %347 = vmatprep.subr.mxu0 0.0
        %348 = vmatpush1.msra.mxu0 0.0
        %349 = vmatprep.subr.mxu0 0.0
        %350 = vmatpush1.msra.mxu0 0.0
        %351 = vmatprep.subr.mxu0 0.0
        %352 = vmatpush1.msra.mxu0 0.0
        %353 = vmatprep.subr.mxu0 0.0
        %354 = vmatpush1.msra.mxu0 0.0
        %355 = vmatprep.subr.mxu0 0.0
        %356 = vmatpush1.msra.mxu0 0.0
        %357 = vmatprep.subr.mxu0 0.0
        %358 = vmatpush1.msra.mxu0 0.0
        %359 = vmatprep.subr.mxu0 0.0
        %360 = vmatpush1.msra.mxu0 0.0
        %361 = vmatprep.mubr.f32.mxu0 0.0
        %362 = vmatmul.mubr.f32.gmra.mrb[0].mxu0 %v288
        %v363 = vpop.f32.mrb[0].mxu0
        %v364 = vadd.f32 %v281, %v363
        %v365 = vpop.f32.mrb[0].mxu0
        %v366 = vadd.f32 %v281, %v365
        %367 = vdwg.mxu0
        %368 = vmatprep.subr.mxu0 0.0
        %369 = vmatpush1.msra.mxu0 %v295
        %370 = vmatprep.subr.mxu0 0.0
        %371 = vmatpush1.msra.mxu0 0.0
        %372 = vmatprep.subr.mxu0 0.0
        %373 = vmatpush1.msra.mxu0 0.0
        %374 = vmatprep.subr.mxu0 0.0
        %375 = vmatpush1.msra.mxu0 0.0
        %376 = vmatprep.subr.mxu0 0.0
        %377 = vmatpush1.msra.mxu0 0.0
        %378 = vmatprep.subr.mxu0 0.0
        %379 = vmatpush1.msra.mxu0 0.0
        %380 = vmatprep.subr.mxu0 0.0
        %381 = vmatpush1.msra.mxu0 0.0
        %382 = vmatprep.subr.mxu0 0.0
        %383 = vmatpush1.msra.mxu0 0.0
        %384 = vmatprep.subr.mxu0 0.0
        %385 = vmatpush1.msra.mxu0 0.0
        %386 = vmatprep.subr.mxu0 0.0
        %387 = vmatpush1.msra.mxu0 0.0
        %388 = vmatprep.subr.mxu0 0.0
        %389 = vmatpush1.msra.mxu0 0.0
        %390 = vmatprep.subr.mxu0 0.0
        %391 = vmatpush1.msra.mxu0 0.0
        %392 = vmatprep.subr.mxu0 0.0
        %393 = vmatpush1.msra.mxu0 0.0
        %394 = vmatprep.subr.mxu0 0.0
        %395 = vmatpush1.msra.mxu0 0.0
        %396 = vmatprep.subr.mxu0 0.0
        %397 = vmatpush1.msra.mxu0 0.0
        %398 = vmatprep.subr.mxu0 0.0
        %399 = vmatpush1.msra.mxu0 0.0
        %400 = vmatprep.subr.mxu0 0.0
        %401 = vmatpush1.msra.mxu0 0.0
        %402 = vmatprep.subr.mxu0 0.0
        %403 = vmatpush1.msra.mxu0 0.0
        %404 = vmatprep.subr.mxu0 0.0
        %405 = vmatpush1.msra.mxu0 0.0
        %406 = vmatprep.subr.mxu0 0.0
        %407 = vmatpush1.msra.mxu0 0.0
        %408 = vmatprep.subr.mxu0 0.0
        %409 = vmatpush1.msra.mxu0 0.0
        %410 = vmatprep.subr.mxu0 0.0
        %411 = vmatpush1.msra.mxu0 0.0
        %412 = vmatprep.subr.mxu0 0.0
        %413 = vmatpush1.msra.mxu0 0.0
        %414 = vmatprep.subr.mxu0 0.0
        %415 = vmatpush1.msra.mxu0 0.0
        %416 = vmatprep.subr.mxu0 0.0
        %417 = vmatpush1.msra.mxu0 0.0
        %418 = vmatprep.subr.mxu0 0.0
        %419 = vmatpush1.msra.mxu0 0.0
        %420 = vmatprep.subr.mxu0 0.0
        %421 = vmatpush1.msra.mxu0 0.0
        %422 = vmatprep.subr.mxu0 0.0
        %423 = vmatpush1.msra.mxu0 0.0
        %424 = vmatprep.subr.mxu0 0.0
        %425 = vmatpush1.msra.mxu0 0.0
        %426 = vmatprep.subr.mxu0 0.0
        %427 = vmatpush1.msra.mxu0 0.0
        %428 = vmatprep.subr.mxu0 0.0
        %429 = vmatpush1.msra.mxu0 0.0
        %430 = vmatprep.subr.mxu0 0.0
        %431 = vmatpush1.msra.mxu0 0.0
        %432 = vmatprep.mubr.f32.mxu0 0.0
        %433 = vmatmul.mubr.f32.gmra.mrb[0].mxu0 %v288
        %v434 = vpop.f32.mrb[0].mxu0
        %v435 = vadd.f32 %v281, %v434
        %v436 = vpop.f32.mrb[0].mxu0
        %437 = vdwg.mxu0
        %vm438 = vcmp.gt.f32.partialorder %v364, 0.0
        %vm439 = vcmp.gt.f32.partialorder %v366, 0.0
        %vm440 = vcmp.gt.f32.partialorder %v435, 0.0
        %v441 = vmul.f32 %v364, 0.1
        %v442 = vmul.f32 %v366, 0.1
        %v443 = vmul.f32 %v435, 0.1
        %v444 = vsel %vm438, %v364, %v441
        %v445 = vsel %vm439, %v366, %v442
        %v446 = vsel %vm440, %v435, %v443
        %v447 = vld [vmem:[%s5] sm:$0x7]
        %v449 = vlaneseq
        %v450 = vshrl.u32 %v449, 7
        %v451 = vsub.s32 0, %v450
        %v452 = vrot.slane %v447, %v451
        %v453 = vlaneseq
        %v454 = vshrl.u32 %v453, 7
        %v455 = vsub.s32 1, %v454
        %v456 = vrot.slane %v447, %v455
        %v457 = vlaneseq
        %v458 = vshrl.u32 %v457, 7
        %v459 = vsub.s32 2, %v458
        %v460 = vrot.slane %v447, %v459
        %v464 = vmul.f32 %v444, %v452
        %v465 = vmul.f32 %v445, %v456
        %v466 = vmul.f32 %v446, %v460
        %v470 = vcombine.low %v464, %v465
        %v472 = vunpack.c.l.s4 1983009808
        %v473 = vunpack.c.0.s8 %v472
        %v474 = vlaneseq
        %v475 = vshrl.u32 %v474, 7
        %v476 = vsub.s32 %v473, %v475
        %v477 = vrot.slane %v470, %v476
        %v479 = vunpack.c.l.s4 1983009808
        %v480 = vunpack.c.0.s8 %v479
        %v481 = vlaneseq
        %v482 = vshrl.u32 %v481, 7
        %v483 = vsub.s32 %v480, %v482
        %v484 = vrot.slane %v466, %v483
        %v485 = vcombine.low %v477, %v484
        %487 = vst [vmem:[#allocation2 + $0x2] sm:$0x3f] %v485
        %v488 = vld [vmem:[#allocation2] sm:$0xff]
        %v489 = vld [vmem:[#allocation2 + $0x2] sm:$0x3f]
        %v490 = vld [vmem:[#allocation2 + $0x2] sm:$0xff]
        %v492 = vcombine.high %v488, %v488
        %v494 = vunpack.c.l.s4 1983009808
        %v495 = vunpack.c.0.s8 %v494
        %v496 = vlaneseq
        %v497 = vshrl.u32 %v496, 7
        %v498 = vsub.s32 %v495, %v497
        %v499 = vrot.slane %v488, %v498
        %v501 = vunpack.c.l.s4 1983009808
        %v502 = vunpack.c.0.s8 %v501
        %v503 = vlaneseq
        %v504 = vshrl.u32 %v503, 7
        %v505 = vsub.s32 %v502, %v504
        %v506 = vrot.slane %v492, %v505
        %v507 = vcombine.high %v499, %v499
        %v508 = vcombine.high %v506, %v506
        %v513 = vcombine.low %v488, %v488
        %v515 = vunpack.c.l.s4 1983009808
        %v516 = vunpack.c.0.s8 %v515
        %v517 = vlaneseq
        %v518 = vshrl.u32 %v517, 7
        %v519 = vsub.s32 %v516, %v518
        %v520 = vrot.slane %v513, %v519
        %v521 = vcombine.high %v520, %v520
        %522 = vrot.lane.b32.xlu0 %v520, 127
        %v523 = vpop.permute.xlu0 %522
        %524 = vrot.lane.b32.xlu0 %v521, 127
        %v525 = vpop.permute.xlu0 %524
        %526 = vrot.lane.b32.xlu0 %v499, 127
        %v527 = vpop.permute.xlu0 %526
        %528 = vrot.lane.b32.xlu0 %v507, 127
        %v529 = vpop.permute.xlu0 %528
        %vm530 = vcmask 1039360
        %v531 = vsel %vm530, %v523, %v525
        %v532 = vsel %vm530, %v525, %v527
        %v533 = vsel %vm530, %v527, %v529
        %v538 = vcombine.low %v499, %v499
        %v539 = vcombine.low %v506, %v506
        %540 = vrot.lane.b32.xlu0 %v538, 126
        %v541 = vpop.permute.xlu0 %540
        %542 = vrot.lane.b32.xlu0 %v499, 126
        %v543 = vpop.permute.xlu0 %542
        %544 = vrot.lane.b32.xlu0 %v539, 126
        %v545 = vpop.permute.xlu0 %544
        %546 = vrot.lane.b32.xlu0 %v506, 126
        %v547 = vpop.permute.xlu0 %546
        %vm548 = vcmask 1031168
        %v549 = vsel %vm548, %v541, %v543
        %v550 = vsel %vm548, %v543, %v545
        %v551 = vsel %vm548, %v545, %v547
        %v556 = vcombine.low %v520, %v520
        %557 = vrot.lane.b32.xlu0 %v556, 110
        %v558 = vpop.permute.xlu0 %557
        %559 = vrot.lane.b32.xlu0 %v520, 110
        %v560 = vpop.permute.xlu0 %559
        %561 = vrot.lane.b32.xlu0 %v538, 110
        %v562 = vpop.permute.xlu0 %561
        %563 = vrot.lane.b32.xlu0 %v499, 110
        %v564 = vpop.permute.xlu0 %563
        %vm565 = vcmask 900096
        %v566 = vsel %vm565, %v558, %v560
        %v567 = vsel %vm565, %v560, %v562
        %v568 = vsel %vm565, %v562, %v564
        %v574 = vcombine.high %v489, %v489
        %v576 = vunpack.c.l.s4 1983009808
        %v577 = vunpack.c.0.s8 %v576
        %v578 = vlaneseq
        %v579 = vshrl.u32 %v578, 7
        %v580 = vsub.s32 %v577, %v579
        %v581 = vrot.slane %v489, %v580
        %v583 = vunpack.c.l.s4 1983009808
        %v584 = vunpack.c.0.s8 %v583
        %v585 = vlaneseq
        %v586 = vshrl.u32 %v585, 7
        %v587 = vsub.s32 %v584, %v586
        %v588 = vrot.slane %v574, %v587
        %v589 = vcombine.high %v581, %v581
        %590 = vrot.lane.b32.xlu0 %v581, 109
        %v591 = vpop.permute.xlu0 %590
        %592 = vrot.lane.b32.xlu0 %v589, 109
        %v593 = vpop.permute.xlu0 %592
        %594 = vrot.lane.b32.xlu0 %v588, 109
        %v595 = vpop.permute.xlu0 %594
        %vm596 = vcmask 891904
        %v597 = vsel %vm596, %v591, %v593
        %v598 = vsel %vm596, %v593, %v595
        %v604 = vcombine.low %v490, %v490
        %v606 = vunpack.c.l.s4 1983009808
        %v607 = vunpack.c.0.s8 %v606
        %v608 = vlaneseq
        %v609 = vshrl.u32 %v608, 7
        %v610 = vsub.s32 %v607, %v609
        %v611 = vrot.slane %v604, %v610
        %v613 = vunpack.c.l.s4 1983009808
        %v614 = vunpack.c.0.s8 %v613
        %v615 = vlaneseq
        %v616 = vshrl.u32 %v615, 7
        %v617 = vsub.s32 %v614, %v616
        %v618 = vrot.slane %v490, %v617
        %v619 = vcombine.high %v611, %v611
        %v620 = vcombine.high %v618, %v618
        %621 = vrot.lane.b32.xlu0 %v611, 108
        %v622 = vpop.permute.xlu0 %621
        %623 = vrot.lane.b32.xlu0 %v619, 108
        %v624 = vpop.permute.xlu0 %623
        %625 = vrot.lane.b32.xlu0 %v618, 108
        %v626 = vpop.permute.xlu0 %625
        %627 = vrot.lane.b32.xlu0 %v620, 108
        %v628 = vpop.permute.xlu0 %627
        %vm629 = vcmask 883712
        %v630 = vsel %vm629, %v622, %v624
        %v631 = vsel %vm629, %v624, %v626
        %v632 = vsel %vm629, %v626, %v628
        %v637 = vcombine.high %v490, %v490
        %v639 = vunpack.c.l.s4 1983009808
        %v640 = vunpack.c.0.s8 %v639
        %v641 = vlaneseq
        %v642 = vshrl.u32 %v641, 7
        %v643 = vsub.s32 %v640, %v642
        %v644 = vrot.slane %v637, %v643
        %v645 = vcombine.low %v618, %v618
        %v646 = vcombine.low %v644, %v644
        %647 = vrot.lane.b32.xlu0 %v645, 92
        %v648 = vpop.permute.xlu0 %647
        %649 = vrot.lane.b32.xlu0 %v618, 92
        %v650 = vpop.permute.xlu0 %649
        %651 = vrot.lane.b32.xlu0 %v646, 92
        %v652 = vpop.permute.xlu0 %651
        %653 = vrot.lane.b32.xlu0 %v644, 92
        %v654 = vpop.permute.xlu0 %653
        %vm655 = vcmask 752640
        %v656 = vsel %vm655, %v648, %v650
        %v657 = vsel %vm655, %v650, %v652
        %v658 = vsel %vm655, %v652, %v654
        %v663 = vcombine.low %v611, %v611
        %664 = vrot.lane.b32.xlu0 %v663, 91
        %v665 = vpop.permute.xlu0 %664
        %666 = vrot.lane.b32.xlu0 %v611, 91
        %v667 = vpop.permute.xlu0 %666
        %668 = vrot.lane.b32.xlu0 %v645, 91
        %v669 = vpop.permute.xlu0 %668
        %670 = vrot.lane.b32.xlu0 %v618, 91
        %v671 = vpop.permute.xlu0 %670
        %vm672 = vcmask 744448
        %v673 = vsel %vm672, %v665, %v667
        %v674 = vsel %vm672, %v667, %v669
        %v675 = vsel %vm672, %v669, %v671
        %v680 = vcombine.high %v644, %v644
        %681 = vrot.lane.b32.xlu0 %v618, 90
        %v682 = vpop.permute.xlu0 %681
        %683 = vrot.lane.b32.xlu0 %v620, 90
        %v684 = vpop.permute.xlu0 %683
        %685 = vrot.lane.b32.xlu0 %v644, 90
        %v686 = vpop.permute.xlu0 %685
        %687 = vrot.lane.b32.xlu0 %v680, 90
        %v688 = vpop.permute.xlu0 %687
        %vm689 = vcmask 736256
        %v690 = vsel %vm689, %v682, %v684
        %v691 = vsel %vm689, %v684, %v686
        %v692 = vsel %vm689, %v686, %v688
        %vm693 = vcmask 1041408
        %v694 = vsel %vm693, %v499, %v531
        %v695 = vsel %vm693, %v507, %v532
        %v696 = vsel %vm693, %v506, %v533
        %v697 = vsel %vm693, %v508, %v529
        %v698 = vsel %vm290, %v694, %v549
        %v699 = vsel %vm290, %v695, %v550
        %v700 = vsel %vm290, %v696, %v551
        %v701 = vsel %vm290, %v697, %v547
        %vm702 = vcmask 1045504
        %v703 = vsel %vm702, %v698, %v566
        %v704 = vsel %vm702, %v699, %v567
        %v705 = vsel %vm702, %v700, %v568
        %v706 = vsel %vm702, %v701, %v564
        %v707 = vsel %vm693, %v591, %v622
        %v708 = vsel %vm693, %v597, %v630
        %v709 = vsel %vm693, %v598, %v631
        %v710 = vsel %vm693, %v595, %v632
        %v711 = vsel %vm290, %v707, %v648
        %v712 = vsel %vm290, %v708, %v656
        %v713 = vsel %vm290, %v709, %v657
        %v714 = vsel %vm290, %v710, %v658
        %v715 = vsel %vm702, %v711, %v665
        %v716 = vsel %vm702, %v712, %v673
        %v717 = vsel %vm702, %v713, %v674
        %v718 = vsel %vm702, %v714, %v675
        %v719 = vld [vmem:[%s3] sm:$0xf]
        %v720 = vld [vmem:[%s4] sm:$0xf]
        %722 = vset.pattern.permute.xlu0 0
        %723 = vperm.xlu0 %722, %v720
        %v724 = vpop.permute.xlu0 %723
        %734 = vrot.lane.b32.xlu0 %v703, 19
        %v735 = vpop.permute.xlu0 %734
        %736 = vrot.lane.b32.xlu0 %v704, 19
        %v737 = vpop.permute.xlu0 %736
        %738 = vrot.lane.b32.xlu0 %v705, 19
        %v739 = vpop.permute.xlu0 %738
        %740 = vrot.lane.b32.xlu0 %v706, 19
        %v741 = vpop.permute.xlu0 %740
        %742 = vrot.lane.b32.xlu0 %v715, 19
        %v743 = vpop.permute.xlu0 %742
        %744 = vrot.lane.b32.xlu0 %v716, 19
        %v745 = vpop.permute.xlu0 %744
        %746 = vrot.lane.b32.xlu0 %v717, 19
        %v747 = vpop.permute.xlu0 %746
        %748 = vrot.lane.b32.xlu0 %v718, 19
        %v749 = vpop.permute.xlu0 %748
        %750 = vrot.lane.b32.xlu0 %v682, 19
        %v751 = vpop.permute.xlu0 %750
        %752 = vrot.lane.b32.xlu0 %v690, 19
        %v753 = vpop.permute.xlu0 %752
        %754 = vrot.lane.b32.xlu0 %v691, 19
        %v755 = vpop.permute.xlu0 %754
        %756 = vrot.lane.b32.xlu0 %v692, 19
        %v757 = vpop.permute.xlu0 %756
        %vm758 = vcmask 154624
        %v759 = vsel %vm758, %v735, %v737
        %v760 = vsel %vm758, %v737, %v739
        %v761 = vsel %vm758, %v739, %v741
        %v762 = vsel %vm758, %v743, %v745
        %v763 = vsel %vm758, %v745, %v747
        %v764 = vsel %vm758, %v747, %v749
        %v765 = vsel %vm758, %v751, %v753
        %v766 = vsel %vm758, %v753, %v755
        %v767 = vsel %vm758, %v755, %v757
        %vm774 = vcmask 146432
        %v776 = vsel %vm774, %v719, 0
        %v778 = vsel %vm693, %v765, 0
        %v780 = vsel %vm693, %v766, 0
        %v782 = vsel %vm693, %v767, 0
        %784 = vmatprep.subr.mxu0 %v760
        %785 = vmatpush1.msra.mxu0 %v759
        %786 = vmatprep.subr.mxu0 %v763
        %787 = vmatpush1.msra.mxu0 %v762
        %788 = vmatprep.subr.mxu0 %v780
        %789 = vmatpush1.msra.mxu0 %v778
        %790 = vmatprep.subr.mxu0 0.0
        %791 = vmatpush1.msra.mxu0 0.0
        %792 = vmatprep.subr.mxu0 0.0
        %793 = vmatpush1.msra.mxu0 0.0
        %794 = vmatprep.subr.mxu0 0.0
        %795 = vmatpush1.msra.mxu0 0.0
        %796 = vmatprep.subr.mxu0 0.0
        %797 = vmatpush1.msra.mxu0 0.0
        %798 = vmatprep.subr.mxu0 0.0
        %799 = vmatpush1.msra.mxu0 0.0
        %800 = vmatprep.subr.mxu0 0.0
        %801 = vmatpush1.msra.mxu0 0.0
        %802 = vmatprep.subr.mxu0 0.0
        %803 = vmatpush1.msra.mxu0 0.0
        %804 = vmatprep.subr.mxu0 0.0
        %805 = vmatpush1.msra.mxu0 0.0
        %806 = vmatprep.subr.mxu0 0.0
        %807 = vmatpush1.msra.mxu0 0.0
        %808 = vmatprep.subr.mxu0 0.0
        %809 = vmatpush1.msra.mxu0 0.0
        %810 = vmatprep.subr.mxu0 0.0
        %811 = vmatpush1.msra.mxu0 0.0
        %812 = vmatprep.subr.mxu0 0.0
        %813 = vmatpush1.msra.mxu0 0.0
        %814 = vmatprep.subr.mxu0 0.0
        %815 = vmatpush1.msra.mxu0 0.0
        %816 = vmatprep.subr.mxu0 0.0
        %817 = vmatpush1.msra.mxu0 0.0
        %818 = vmatprep.subr.mxu0 0.0
        %819 = vmatpush1.msra.mxu0 0.0
        %820 = vmatprep.subr.mxu0 0.0
        %821 = vmatpush1.msra.mxu0 0.0
        %822 = vmatprep.subr.mxu0 0.0
        %823 = vmatpush1.msra.mxu0 0.0
        %824 = vmatprep.subr.mxu0 0.0
        %825 = vmatpush1.msra.mxu0 0.0
        %826 = vmatprep.subr.mxu0 0.0
        %827 = vmatpush1.msra.mxu0 0.0
        %828 = vmatprep.subr.mxu0 0.0
        %829 = vmatpush1.msra.mxu0 0.0
        %830 = vmatprep.subr.mxu0 0.0
        %831 = vmatpush1.msra.mxu0 0.0
        %832 = vmatprep.subr.mxu0 0.0
        %833 = vmatpush1.msra.mxu0 0.0
        %834 = vmatprep.subr.mxu0 0.0
        %835 = vmatpush1.msra.mxu0 0.0
        %836 = vmatprep.subr.mxu0 0.0
        %837 = vmatpush1.msra.mxu0 0.0
        %838 = vmatprep.subr.mxu0 0.0
        %839 = vmatpush1.msra.mxu0 0.0
        %840 = vmatprep.subr.mxu0 0.0
        %841 = vmatpush1.msra.mxu0 0.0
        %842 = vmatprep.subr.mxu0 0.0
        %843 = vmatpush1.msra.mxu0 0.0
        %844 = vmatprep.subr.mxu0 0.0
        %845 = vmatpush1.msra.mxu0 0.0
        %846 = vmatprep.subr.mxu0 0.0
        %847 = vmatpush1.msra.mxu0 0.0
        %848 = vmatprep.mubr.f32.mxu0 0.0
        %849 = vmatmul.mubr.f32.gmra.mrb[0].mxu0 %v776
        %v850 = vpop.f32.mrb[0].mxu0
        %v851 = vadd.f32 %v724, %v850
        %v852 = vpop.f32.mrb[0].mxu0
        %v853 = vadd.f32 %v724, %v852
        %854 = vdwg.mxu0
        %855 = vmatprep.subr.mxu0 0.0
        %856 = vmatpush1.msra.mxu0 %v761
        %857 = vmatprep.subr.mxu0 0.0
        %858 = vmatpush1.msra.mxu0 %v764
        %859 = vmatprep.subr.mxu0 0.0
        %860 = vmatpush1.msra.mxu0 %v782
        %861 = vmatprep.subr.mxu0 0.0
        %862 = vmatpush1.msra.mxu0 0.0
        %863 = vmatprep.subr.mxu0 0.0
        %864 = vmatpush1.msra.mxu0 0.0
        %865 = vmatprep.subr.mxu0 0.0
        %866 = vmatpush1.msra.mxu0 0.0
        %867 = vmatprep.subr.mxu0 0.0
        %868 = vmatpush1.msra.mxu0 0.0
        %869 = vmatprep.subr.mxu0 0.0
        %870 = vmatpush1.msra.mxu0 0.0
        %871 = vmatprep.subr.mxu0 0.0
        %872 = vmatpush1.msra.mxu0 0.0
        %873 = vmatprep.subr.mxu0 0.0
        %874 = vmatpush1.msra.mxu0 0.0
        %875 = vmatprep.subr.mxu0 0.0
        %876 = vmatpush1.msra.mxu0 0.0
        %877 = vmatprep.subr.mxu0 0.0
        %878 = vmatpush1.msra.mxu0 0.0
        %879 = vmatprep.subr.mxu0 0.0
        %880 = vmatpush1.msra.mxu0 0.0
        %881 = vmatprep.subr.mxu0 0.0
        %882 = vmatpush1.msra.mxu0 0.0
        %883 = vmatprep.subr.mxu0 0.0
        %884 = vmatpush1.msra.mxu0 0.0
        %885 = vmatprep.subr.mxu0 0.0
        %886 = vmatpush1.msra.mxu0 0.0
        %887 = vmatprep.subr.mxu0 0.0
        %888 = vmatpush1.msra.mxu0 0.0
        %889 = vmatprep.subr.mxu0 0.0
        %890 = vmatpush1.msra.mxu0 0.0
        %891 = vmatprep.subr.mxu0 0.0
        %892 = vmatpush1.msra.mxu0 0.0
        %893 = vmatprep.subr.mxu0 0.0
        %894 = vmatpush1.msra.mxu0 0.0
        %895 = vmatprep.subr.mxu0 0.0
        %896 = vmatpush1.msra.mxu0 0.0
        %897 = vmatprep.subr.mxu0 0.0
        %898 = vmatpush1.msra.mxu0 0.0
        %899 = vmatprep.subr.mxu0 0.0
        %900 = vmatpush1.msra.mxu0 0.0
        %901 = vmatprep.subr.mxu0 0.0
        %902 = vmatpush1.msra.mxu0 0.0
        %903 = vmatprep.subr.mxu0 0.0
        %904 = vmatpush1.msra.mxu0 0.0
        %905 = vmatprep.subr.mxu0 0.0
        %906 = vmatpush1.msra.mxu0 0.0
        %907 = vmatprep.subr.mxu0 0.0
        %908 = vmatpush1.msra.mxu0 0.0
        %909 = vmatprep.subr.mxu0 0.0
        %910 = vmatpush1.msra.mxu0 0.0
        %911 = vmatprep.subr.mxu0 0.0
        %912 = vmatpush1.msra.mxu0 0.0
        %913 = vmatprep.subr.mxu0 0.0
        %914 = vmatpush1.msra.mxu0 0.0
        %915 = vmatprep.subr.mxu0 0.0
        %916 = vmatpush1.msra.mxu0 0.0
        %917 = vmatprep.subr.mxu0 0.0
        %918 = vmatpush1.msra.mxu0 0.0
        %919 = vmatprep.mubr.f32.mxu0 0.0
        %920 = vmatmul.mubr.f32.gmra.mrb[0].mxu0 %v776
        %v921 = vpop.f32.mrb[0].mxu0
        %v922 = vadd.f32 %v724, %v921
        %v923 = vpop.f32.mrb[0].mxu0
        %924 = vdwg.mxu0
        %vm925 = vcmp.gt.f32.partialorder %v851, 0.0
        %vm926 = vcmp.gt.f32.partialorder %v853, 0.0
        %vm927 = vcmp.gt.f32.partialorder %v922, 0.0
        %v928 = vmul.f32 %v851, 0.1
        %v929 = vmul.f32 %v853, 0.1
        %v930 = vmul.f32 %v922, 0.1
        %v931 = vsel %vm925, %v851, %v928
        %v932 = vsel %vm926, %v853, %v929
        %v933 = vsel %vm927, %v922, %v930
        %v936 = vcombine.low %v931, %v932
        %v938 = vadd.f32 %v274, %v936
        %v939 = vadd.f32 %v275, %v933
        %940 = vst [vmem:[%s267] sm:$0xff] %v938
        %941 = vst [vmem:[%s267 + $0x8] sm:$0xf] %v939
        %s942 = sand.u32 %s162, 1
        %s943 = scalar_lea.sflag [#allocation5], %s942
        %s944 = sand.u32 %s162, 1
        %s945 = smul.addr %s944, 12
        %s946 = scalar_lea.vmem [#allocation6], %s945
        // Predicated region
        $region53: #{tpu_custom_call.1} parent=43 // pred_check
          %p947 = pneg %p172
        $region54: #{tpu_custom_call.1} parent=43 // pred_check_branch
          %949 = sbr.rel (%p947) target = $region56
        $region55: #{tpu_custom_call.1} parent=43 // pred_region
          %s951 = ssub.s32 192, 192
          %952 = vsyncadd %s943, %s951
          %s953 = smul.addr %s23, 3
          %s954 = smul.addr %s953, 64
          %s955 = scalar_lea.hbm %s6, %s954
          %s957 = sshll.u32 %s946, 4
          %s958 = int_to_ptr.vmem [resolvable:$true] %s957
          %960 = dma.vmem_to_hbm [thread:$0]  %s958, 192, %s955, %s943
        $region56: #{tpu_custom_call.1} parent=43 // pred_fallthru
          _
      $region44: #{tpu_custom_call.1} parent=5 // pred_fallthru
        _
      %p961 = scmp.le.s32.totalorder 2, %s18
      // Predicated region
      $region57: #{tpu_custom_call.1} parent=5 // pred_check
        %p962 = pneg %p961
      $region58: #{tpu_custom_call.1} parent=5 // pred_check_branch
        %964 = sbr.rel (%p962) target = $region60
      $region59: #{tpu_custom_call.1} parent=5 // pred_region
        %s965 = ssub.s32 %s18, 2
        // Predicated region
        $region61: #{tpu_custom_call.1} parent=59 // pred_check
          %p966 = pneg %p178
        $region62: #{tpu_custom_call.1} parent=59 // pred_check_branch
          %968 = sbr.rel (%p966) target = $region64
        $region63: #{tpu_custom_call.1} parent=59 // pred_region
          %s969 = sand.u32 %s163, 1
          %s970 = scalar_lea.sflag [#allocation5], %s969
          %s971 = sand.u32 %s163, 1
          %s972 = smul.addr %s971, 12
          %s973 = scalar_lea.vmem [#allocation6], %s972
          %974 = dma.done %s970, 192
        $region64: #{tpu_custom_call.1} parent=59 // pred_fallthru
          _
      $region60: #{tpu_custom_call.1} parent=5 // pred_fallthru
        _
    $region6: #{tpu_custom_call.1} parent=1 // loop_footer
      %s22 = sadd.s32 1, %s18
    $region7: #{tpu_custom_call.1} parent=1 // loop_footer_branch
      %17 = sbr.rel target = $region3
    $region8: #{tpu_custom_call.1} parent=1 // loop_exit
      _
    %975 = vsyncpa [#allocation4], 1
    %s976 = scalar_lea.sflag [#allocation4], 1
    %977 = vsyncpa %s976, 1
    %978 = vsyncpa [#allocation5], 1
    %s979 = scalar_lea.sflag [#allocation5], 1
    %980 = vsyncpa %s979, 1

</llo_original>
